<compile_context>
chip_gen: v5e
topology: v5e:2x2
jax: 0.10.0
libtpu: 0.0.40
codegen_flags: <defaults>
</compile_context>

<pallas_src>
import functools

import jax
import jax.numpy as jnp
from jax.experimental import pallas as pl
from jax.experimental.pallas import tpu as pltpu


def _round_up(x, m):
    return ((x + m - 1) // m) * m


def conv_bn_relu_kernel(x_ref, w_ref, s_ref, b_ref, o_ref):
    # x_ref: (TM, Kp)      bf16  im2col rows (flat output positions) for this tile
    # w_ref: (Kp, Coutp)   bf16  packed conv weights
    # s_ref: (1, Coutp)    f32   BN scale (gamma / sqrt(var + eps))
    # b_ref: (1, Coutp)    f32   BN bias  (beta - mean * scale)
    # o_ref: (TM, Coutp)   bf16  output tile (lane-dense)
    acc = jnp.dot(x_ref[...], w_ref[...], preferred_element_type=jnp.float32)
    y = acc * s_ref[...] + b_ref[...]          # folded BatchNorm (eval mode), f32
    o_ref[...] = jnp.maximum(y, 0.0).astype(o_ref.dtype)   # ReLU, bf16 store


@functools.partial(jax.jit, static_argnames=("ks", "stride", "padding", "eps"))
def conv_bn_relu(x_nchw, weight, gamma, beta, running_mean, running_var,
                 ks=3, stride=1, padding=1, eps=1e-5):
    assert stride == 1 and padding == (ks - 1) // 2, \
        "kernel implements the module defaults (stride=1, 'same' padding)"
    N, Cin, H, W = x_nchw.shape
    Cout = weight.shape[0]

    K = ks * ks * Cin                      # fused contraction depth
    Kp = _round_up(K, 8)
    Coutp = _round_up(Cout, 128)           # lane-dense output stores
    Mq = H * W                             # exact output positions -> no junk cols
    TM = min(512, _round_up(Mq, 8))        # output-row tile (accumulator stays resident)
    Mq_pad = _round_up(Mq, TM)

    # ---- BN folding (eval mode): keep scale/bias in f32, applied post-matmul ----
    scale = gamma / jnp.sqrt(running_var + eps)                  # (Cout,)
    bias = beta - running_mean * scale                           # (Cout,)
    scale_p = jnp.pad(scale, (0, Coutp - Cout)).astype(jnp.float32).reshape(1, Coutp)
    bias_p = jnp.pad(bias, (0, Coutp - Cout)).astype(jnp.float32).reshape(1, Coutp)

    # ---- weight packing: OIHW -> (kh, kw, Cin, Cout) -> (K, Cout) -> (Kp, Coutp) bf16 ----
    w_col = jnp.transpose(weight, (2, 3, 1, 0)).reshape(K, Cout)
    w_col = jnp.pad(w_col, ((0, Kp - K), (0, Coutp - Cout))).astype(jnp.bfloat16)

    # ---- lane-dense im2col LHS: (N, Mq_pad, Kp) bf16, contraction dim last ----
    x_nhwc = jnp.transpose(x_nchw, (0, 2, 3, 1)).astype(jnp.bfloat16)
    xp = jnp.pad(x_nhwc, ((0, 0), (padding, padding), (padding, padding), (0, 0)))
    cols = [xp[:, kh:kh + H, kw:kw + W, :] for kh in range(ks) for kw in range(ks)]
    x_col = jnp.concatenate(cols, axis=-1).reshape(N, Mq, K)
    x_col = jnp.pad(x_col, ((0, 0), (0, Mq_pad - Mq), (0, Kp - K)))

    grid = (N, Mq_pad // TM)
    out = pl.pallas_call(
        conv_bn_relu_kernel,
        out_shape=jax.ShapeDtypeStruct((N, Mq_pad, Coutp), jnp.bfloat16),
        grid_spec=pltpu.PrefetchScalarGridSpec(
            num_scalar_prefetch=0,
            grid=grid,
            in_specs=[
                pl.BlockSpec((None, TM, Kp), lambda n, m: (n, m, 0)),   # x tile
                pl.BlockSpec((Kp, Coutp), lambda n, m: (0, 0)),         # weights (resident)
                pl.BlockSpec((1, Coutp), lambda n, m: (0, 0)),          # BN scale
                pl.BlockSpec((1, Coutp), lambda n, m: (0, 0)),          # BN bias
            ],
            out_specs=pl.BlockSpec((None, TM, Coutp), lambda n, m: (n, m, 0)),
        ),
        compiler_params=pltpu.CompilerParams(
            # both axes independent -> v7x's 2 TensorCores split (batch x row-tiles)
            dimension_semantics=("parallel", "parallel")),
    )(x_col, w_col, scale_p, bias_p)

    # Test-harness glue: drop padded rows/channels, back to NCHW f32.
    out = out[:, :Mq, :Cout].reshape(N, H, W, Cout)
    return jnp.transpose(out, (0, 3, 1, 2)).astype(jnp.float32)


def _reference(x_nchw, weight, gamma, beta, running_mean, running_var, eps=1e-5):
    y = jax.lax.conv_general_dilated(
        x_nchw.astype(jnp.float32), weight.astype(jnp.float32),
        window_strides=(1, 1), padding=((1, 1), (1, 1)),
        dimension_numbers=("NCHW", "OIHW", "NCHW"))
    s = gamma / jnp.sqrt(running_var + eps)
    b = beta - running_mean * s
    y = y * s[None, :, None, None] + b[None, :, None, None]
    return jnp.maximum(y, 0.0)


if __name__ == "__main__":
    key = jax.random.PRNGKey(0)
    k_x, k_w, k_g, k_b, k_m, k_v = jax.random.split(key, 6)

    N, Cin, H, W = 2, 4, 16, 16
    Cout, ks = 8, 3

    x = jax.random.normal(k_x, (N, Cin, H, W), dtype=jnp.float32)
    weight = jax.random.normal(k_w, (Cout, Cin, ks, ks), dtype=jnp.float32) * 0.1
    gamma = 1.0 + 0.1 * jax.random.normal(k_g, (Cout,), dtype=jnp.float32)
    beta = 0.1 * jax.random.normal(k_b, (Cout,), dtype=jnp.float32)
    running_mean = 0.1 * jax.random.normal(k_m, (Cout,), dtype=jnp.float32)
    running_var = 1.0 + 0.1 * jnp.abs(jax.random.normal(k_v, (Cout,), dtype=jnp.float32))

    out = conv_bn_relu(x, weight, gamma, beta, running_mean, running_var)
    out = jax.block_until_ready(out)

    ref = _reference(x, weight, gamma, beta, running_mean, running_var)
    assert out.shape == (N, Cout, H, W)
    max_err = float(jnp.max(jnp.abs(out - ref)))
    # bf16 MXU inputs + bf16 output store with f32 accumulation -> loosened tolerance.
    assert jnp.allclose(out, ref, atol=3e-2, rtol=3e-2), \
        f"mismatch vs. reference, max|err|={max_err}"

    print("KERNEL_OK")
</pallas_src>

<mosaic_0001>
module attributes {stable_mosaic.version = 11 : i64} {
  func.func @conv_bn_relu_kernel(%arg0: i32, %arg1: i32, %arg2: memref<1x256x40xbf16, #tpu.memory_space<vmem>>, %arg3: memref<40x128xbf16, #tpu.memory_space<vmem>>, %arg4: memref<1x128xf32, #tpu.memory_space<vmem>>, %arg5: memref<1x128xf32, #tpu.memory_space<vmem>>, %arg6: memref<1x256x128xbf16, #tpu.memory_space<vmem>>) attributes {dimension_semantics = [#tpu.dimension_semantics<parallel>, #tpu.dimension_semantics<parallel>], iteration_bounds = array<i64: 2, 1>, scalar_prefetch = 0 : i64, scratch_operands = 0 : i64, tpu.core_type = #tpu.core_type<tc>, window_params = [{transform_indices = @transform_0, window_bounds = array<i64: 1, 256, 40>}, {pipeline_mode = #tpu.pipeline_mode<synchronous>, transform_indices = @transform_1, window_bounds = array<i64: 40, 128>}, {pipeline_mode = #tpu.pipeline_mode<synchronous>, transform_indices = @transform_2, window_bounds = array<i64: 1, 128>}, {pipeline_mode = #tpu.pipeline_mode<synchronous>, transform_indices = @transform_3, window_bounds = array<i64: 1, 128>}, {transform_indices = @transform_4, window_bounds = array<i64: 1, 256, 128>}]} {
    %c0 = arith.constant 0 : index
    %c0_0 = arith.constant 0 : index
    %c0_1 = arith.constant 0 : index
    %0 = vector.load %arg2[%c0, %c0_0, %c0_1] : memref<1x256x40xbf16, #tpu.memory_space<vmem>>, vector<1x256x40xbf16>
    %1 = vector.shape_cast %0 : vector<1x256x40xbf16> to vector<256x40xbf16>
    %c0_2 = arith.constant 0 : index
    %c0_3 = arith.constant 0 : index
    %2 = vector.load %arg3[%c0_2, %c0_3] : memref<40x128xbf16, #tpu.memory_space<vmem>>, vector<40x128xbf16>
    %cst = arith.constant dense<0.000000e+00> : vector<256x128xf32>
    %3 = tpu.matmul %1, %2, %cst {dimension_numbers = #tpu.dot_dimension_numbers<[1], [0], [0], [1], [0, 0, 1, 1], [], []>} : vector<256x40xbf16>, vector<40x128xbf16>, vector<256x128xf32> -> vector<256x128xf32>
    %c0_4 = arith.constant 0 : index
    %c0_5 = arith.constant 0 : index
    %4 = vector.load %arg4[%c0_4, %c0_5] : memref<1x128xf32, #tpu.memory_space<vmem>>, vector<1x128xf32>
    %5 = vector.broadcast %4 : vector<1x128xf32> to vector<256x128xf32>
    %6 = arith.mulf %3, %5 : vector<256x128xf32>
    %c0_6 = arith.constant 0 : index
    %c0_7 = arith.constant 0 : index
    %7 = vector.load %arg5[%c0_6, %c0_7] : memref<1x128xf32, #tpu.memory_space<vmem>>, vector<1x128xf32>
    %8 = vector.broadcast %7 : vector<1x128xf32> to vector<256x128xf32>
    %9 = arith.addf %6, %8 : vector<256x128xf32>
    %cst_8 = arith.constant 0.000000e+00 : f32
    %10 = vector.broadcast %cst_8 : f32 to vector<256x128xf32>
    %11 = arith.maximumf %9, %10 : vector<256x128xf32>
    %12 = arith.truncf %11 : vector<256x128xf32> to vector<256x128xbf16>
    %c0_9 = arith.constant 0 : index
    %c0_10 = arith.constant 0 : index
    %c0_11 = arith.constant 0 : index
    %13 = vector.load %arg6[%c0_9, %c0_10, %c0_11] : memref<1x256x128xbf16, #tpu.memory_space<vmem>>, vector<1x256x128xbf16>
    %14 = vector.shape_cast %13 : vector<1x256x128xbf16> to vector<256x128xbf16>
    %15 = vector.shape_cast %12 : vector<256x128xbf16> to vector<1x256x128xbf16>
    tpu.vector_store %arg6[%c0_9, %c0_10, %c0_11], %15 {strides = array<i32>} : memref<1x256x128xbf16, #tpu.memory_space<vmem>>, vector<1x256x128xbf16>,
    return
  }
  func.func @transform_0(%arg0: i32, %arg1: i32) -> (i32, i32, i32) {
    %c0_i32 = arith.constant 0 : i32
    %c0_i32_0 = arith.constant 0 : i32
    return %arg0, %arg1, %c0_i32 : i32, i32, i32
  }
  func.func @transform_1(%arg0: i32, %arg1: i32) -> (i32, i32) {
    %c0_i32 = arith.constant 0 : i32
    %c0_i32_0 = arith.constant 0 : i32
    %c0_i32_1 = arith.constant 0 : i32
    return %c0_i32, %c0_i32_0 : i32, i32
  }
  func.func @transform_2(%arg0: i32, %arg1: i32) -> (i32, i32) {
    %c0_i32 = arith.constant 0 : i32
    %c0_i32_0 = arith.constant 0 : i32
    %c0_i32_1 = arith.constant 0 : i32
    return %c0_i32, %c0_i32_0 : i32, i32
  }
  func.func @transform_3(%arg0: i32, %arg1: i32) -> (i32, i32) {
    %c0_i32 = arith.constant 0 : i32
    %c0_i32_0 = arith.constant 0 : i32
    %c0_i32_1 = arith.constant 0 : i32
    return %c0_i32, %c0_i32_0 : i32, i32
  }
  func.func @transform_4(%arg0: i32, %arg1: i32) -> (i32, i32, i32) {
    %c0_i32 = arith.constant 0 : i32
    %c0_i32_0 = arith.constant 0 : i32
    return %arg0, %arg1, %c0_i32 : i32, i32, i32
  }
}

</mosaic_0001>

<llo_original>
// kernel: conv_bn_relu.1
$region0: #{conv_bn_relu.1}
  #allocation0 [shape = 'u32[]', space=smem, size = 0x4, offset = 0x4, fixed_abs, tag = 'smem constant byte address 0x4 - core index']
  #allocation1 [shape = 'u32[72,128]{1,0:T(1,128)}', space=vmem, size = 0x9000, scoped, tag = 'internal scratch']
  %s0 = inlined_call_operand.vmem [shape: bf16[2,256,40], index: 0, kind: input, shape index: {}]
  %s1 = inlined_call_operand.vmem [shape: bf16[40,128], index: 1, kind: input, shape index: {}]
  %s2 = inlined_call_operand.vmem [shape: f32[1,128], index: 2, kind: input, shape index: {}]
  %s3 = inlined_call_operand.vmem [shape: f32[1,128], index: 3, kind: input, shape index: {}]
  %s4 = inlined_call_operand.vmem [shape: bf16[2,256,128], index: 4, kind: output, shape index: {}]
  %s5 = sld [smem:[#allocation0]]
  $region49: #{conv_bn_relu.1} parent=0
    _
  %s7 = ssub.s32 1, %s5
  %s8 = scalar_select 0, %s7, %s5
  loop: start=0, step=1, limit=4
  $region2: #{conv_bn_relu.1} parent=0 // loop_pre_header
    _
  $region3: #{conv_bn_relu.1} parent=0 // loop_header
    %s10 = sphi 0, %s14
    %p11 = scmp.ge.s32.totalorder %s10, 4
    %s17 = sphi 0, %s29
    %s18 = sphi 0, %s25
    %s19 = sphi 0, %s17
    %s20 = sphi 0, %s18
    %s21 = sphi 0, %s19
    %s22 = sphi 0, %s20
    %s34 = sphi 0, %s36
    %s37 = sphi 0, %s34
    %s38 = sphi 0, %s37
    %s54 = sphi 0, %s38
    %s58 = sphi 0, %s58
    %s60 = sphi 0, %s58
    %s61 = sphi 0, %s60
    %s75 = sphi 0, %s61
    %s79 = sphi 0, %s79
    %s81 = sphi 0, %s79
    %s82 = sphi 0, %s81
    %s96 = sphi 0, %s82
    %s100 = sphi 0, %s100
    %s102 = sphi 0, %s100
    %s103 = sphi 0, %s102
    %s117 = sphi 0, %s103
    %s125 = sphi 0, %s127
    %s128 = sphi 0, %s125
    %s129 = sphi 0, %s128
    %s145 = sphi 0, %s129
  $region4: #{conv_bn_relu.1} parent=0 // loop_header_branch
    %13 = sbr.rel (%p11) target = $region8
  $region5: #{conv_bn_relu.1} parent=0 // loop_body
    %s15 = ssub.s32 %s10, 1
    %s16 = ssub.s32 %s10, 2
    %s23 = sadd.s32 1, %s18
    %p24 = scmp.ge.s32.totalorder %s23, 1
    %s25 = scalar_select %p24, 0, %s23
    %s26 = sadd.s32 1, %s17
    %s27 = scalar_select %p24, %s26, %s17
    %p28 = scmp.ge.s32.totalorder %s27, 2
    %s29 = scalar_select %p28, 0, %s27
    %s30 = ssub.s32 %s17, %s29
    %s31 = ssub.s32 %s18, %s25
    %s32 = sor.u32 %s30, %s31
    %p33 = scmp.eq.s32.totalorder %s32, 0
    %s35 = sadd.s32 %s34, 1
    %s36 = scalar_select %p33, %s34, %s35
    %p39 = pneg %p33
    %p40 = scmp.eq.s32.totalorder %s10, 1
    %p41 = por %p39, %p40
    %p42 = scmp.ne.s32.totalorder %s34, %s37
    %p43 = scmp.eq.s32.totalorder %s10, 0
    %p44 = por %p42, %p43
    %p45 = scmp.ne.s32.totalorder %s34, %s37
    %p46 = scmp.eq.s32.totalorder %s15, 1
    %p47 = por %p45, %p46
    %p48 = scmp.ne.s32.totalorder %s37, %s38
    %p49 = scmp.eq.s32.totalorder %s15, 0
    %p50 = por %p48, %p49
    %p51 = scmp.ne.s32.totalorder %s37, %s38
    %p52 = scmp.eq.s32.totalorder %s16, 1
    %p53 = por %p51, %p52
    %p55 = scmp.ne.s32.totalorder %s38, %s54
    %p56 = scmp.eq.s32.totalorder %s16, 0
    %p57 = por %p55, %p56
    %s59 = sadd.s32 %s58, 1
    %p62 = scmp.eq.s32.totalorder %s10, 1
    %p63 = scmp.ne.s32.totalorder %s58, %s60
    %p64 = scmp.eq.s32.totalorder %s10, 0
    %p65 = por %p63, %p64
    %p66 = scmp.ne.s32.totalorder %s58, %s60
    %p67 = scmp.eq.s32.totalorder %s15, 1
    %p68 = por %p66, %p67
    %p69 = scmp.ne.s32.totalorder %s60, %s61
    %p70 = scmp.eq.s32.totalorder %s15, 0
    %p71 = por %p69, %p70
    %p72 = scmp.ne.s32.totalorder %s60, %s61
    %p73 = scmp.eq.s32.totalorder %s16, 1
    %p74 = por %p72, %p73
    %p76 = scmp.ne.s32.totalorder %s61, %s75
    %p77 = scmp.eq.s32.totalorder %s16, 0
    %p78 = por %p76, %p77
    %s80 = sadd.s32 %s79, 1
    %p83 = scmp.eq.s32.totalorder %s10, 1
    %p84 = scmp.ne.s32.totalorder %s79, %s81
    %p85 = scmp.eq.s32.totalorder %s10, 0
    %p86 = por %p84, %p85
    %p87 = scmp.ne.s32.totalorder %s79, %s81
    %p88 = scmp.eq.s32.totalorder %s15, 1
    %p89 = por %p87, %p88
    %p90 = scmp.ne.s32.totalorder %s81, %s82
    %p91 = scmp.eq.s32.totalorder %s15, 0
    %p92 = por %p90, %p91
    %p93 = scmp.ne.s32.totalorder %s81, %s82
    %p94 = scmp.eq.s32.totalorder %s16, 1
    %p95 = por %p93, %p94
    %p97 = scmp.ne.s32.totalorder %s82, %s96
    %p98 = scmp.eq.s32.totalorder %s16, 0
    %p99 = por %p97, %p98
    %s101 = sadd.s32 %s100, 1
    %p104 = scmp.eq.s32.totalorder %s10, 1
    %p105 = scmp.ne.s32.totalorder %s100, %s102
    %p106 = scmp.eq.s32.totalorder %s10, 0
    %p107 = por %p105, %p106
    %p108 = scmp.ne.s32.totalorder %s100, %s102
    %p109 = scmp.eq.s32.totalorder %s15, 1
    %p110 = por %p108, %p109
    %p111 = scmp.ne.s32.totalorder %s102, %s103
    %p112 = scmp.eq.s32.totalorder %s15, 0
    %p113 = por %p111, %p112
    %p114 = scmp.ne.s32.totalorder %s102, %s103
    %p115 = scmp.eq.s32.totalorder %s16, 1
    %p116 = por %p114, %p115
    %p118 = scmp.ne.s32.totalorder %s103, %s117
    %p119 = scmp.eq.s32.totalorder %s16, 0
    %p120 = por %p118, %p119
    %s121 = ssub.s32 %s17, %s29
    %s122 = ssub.s32 %s18, %s25
    %s123 = sor.u32 %s121, %s122
    %p124 = scmp.eq.s32.totalorder %s123, 0
    %s126 = sadd.s32 %s125, 1
    %s127 = scalar_select %p124, %s125, %s126
    %p130 = pneg %p124
    %p131 = scmp.eq.s32.totalorder %s10, 1
    %p132 = por %p130, %p131
    %p133 = scmp.ne.s32.totalorder %s125, %s128
    %p134 = scmp.eq.s32.totalorder %s10, 0
    %p135 = por %p133, %p134
    %p136 = scmp.ne.s32.totalorder %s125, %s128
    %p137 = scmp.eq.s32.totalorder %s15, 1
    %p138 = por %p136, %p137
    %p139 = scmp.ne.s32.totalorder %s128, %s129
    %p140 = scmp.eq.s32.totalorder %s15, 0
    %p141 = por %p139, %p140
    %p142 = scmp.ne.s32.totalorder %s128, %s129
    %p143 = scmp.eq.s32.totalorder %s16, 1
    %p144 = por %p142, %p143
    %p146 = scmp.ne.s32.totalorder %s129, %s145
    %p147 = scmp.eq.s32.totalorder %s16, 0
    %p148 = por %p146, %p147
    %p149 = scmp.le.s32.totalorder 1, %s10
    %p150 = scmp.lt.s32.totalorder %s10, 3
    %p151 = pnand %p149, %p150
    %p152 = pneg %p151
    // Predicated region
    $region9: #{conv_bn_relu.1} parent=5 // pred_check
      _
    $region10: #{conv_bn_relu.1} parent=5 // pred_check_branch
      %154 = sbr.rel (%p151) target = $region12
    $region11: #{conv_bn_relu.1} parent=5 // pred_region
      %s155 = ssub.s32 %s10, 1
      // Predicated region
      $region13: #{conv_bn_relu.1} parent=11 // pred_check
        %p156 = pneg %p71
      $region14: #{conv_bn_relu.1} parent=11 // pred_check_branch
        %158 = sbr.rel (%p156) target = $region16
      $region15: #{conv_bn_relu.1} parent=11 // pred_region
        _
      $region16: #{conv_bn_relu.1} parent=11 // pred_fallthru
        _
      // Predicated region
      $region17: #{conv_bn_relu.1} parent=11 // pred_check
        %p159 = pneg %p92
      $region18: #{conv_bn_relu.1} parent=11 // pred_check_branch
        %161 = sbr.rel (%p159) target = $region20
      $region19: #{conv_bn_relu.1} parent=11 // pred_region
        _
      $region20: #{conv_bn_relu.1} parent=11 // pred_fallthru
        _
      // Predicated region
      $region21: #{conv_bn_relu.1} parent=11 // pred_check
        %p162 = pneg %p113
      $region22: #{conv_bn_relu.1} parent=11 // pred_check_branch
        %164 = sbr.rel (%p162) target = $region24
      $region23: #{conv_bn_relu.1} parent=11 // pred_region
        _
      $region24: #{conv_bn_relu.1} parent=11 // pred_fallthru
        _
    $region12: #{conv_bn_relu.1} parent=5 // pred_fallthru
      _
    %p165 = scmp.lt.s32.totalorder %s10, 2
    // Predicated region
    $region25: #{conv_bn_relu.1} parent=5 // pred_check
      %p166 = pneg %p165
    $region26: #{conv_bn_relu.1} parent=5 // pred_check_branch
      %168 = sbr.rel (%p166) target = $region28
    $region27: #{conv_bn_relu.1} parent=5 // pred_region
      // Predicated region
      $region29: #{conv_bn_relu.1} parent=27 // pred_check
        %p169 = pneg %p44
      $region30: #{conv_bn_relu.1} parent=27 // pred_check_branch
        %171 = sbr.rel (%p169) target = $region32
      $region31: #{conv_bn_relu.1} parent=27 // pred_region
        %s172 = smul.u32 32, %s18
        %p173 = scmp.lt.s32.totalorder %s17, 1
        %s174 = scalar_select %p173, %s17, 1
        %p175 = scmp.lt.s32.totalorder %s172, 31
        %s176 = scalar_select %p175, %s172, 31
        %s177 = smul.addr %s174, 32
        %s178 = sadd.s32 %s176, %s177
        %s179 = smul.addr %s178, 4
        %s180 = scalar_lea.vmem %s0, %s179
        %s181 = smul.u32 32, %s18
      $region32: #{conv_bn_relu.1} parent=27 // pred_fallthru
        _
    $region28: #{conv_bn_relu.1} parent=5 // pred_fallthru
      _
    %p182 = scmp.le.s32.totalorder 1, %s10
    %p183 = scmp.lt.s32.totalorder %s10, 3
    %p184 = pnand %p182, %p183
    %p185 = pneg %p184
    // Predicated region
    $region33: #{conv_bn_relu.1} parent=5 // pred_check
      _
    $region34: #{conv_bn_relu.1} parent=5 // pred_check_branch
      %187 = sbr.rel (%p184) target = $region36
    $region35: #{conv_bn_relu.1} parent=5 // pred_region
      %s188 = ssub.s32 %s10, 1
      %s189 = smul.u32 32, %s20
      %p190 = scmp.lt.s32.totalorder %s19, 1
      %s191 = scalar_select %p190, %s19, 1
      %p192 = scmp.lt.s32.totalorder %s189, 31
      %s193 = scalar_select %p192, %s189, 31
      %s194 = smul.addr %s191, 32
      %s195 = sadd.s32 %s193, %s194
      %s196 = smul.addr %s195, 4
      %s197 = scalar_lea.vmem %s0, %s196
      %p198 = pneg %p50
      %p199 = pneg %p47
      %p200 = pneg %p71
      %p201 = pneg %p68
      %p202 = pneg %p92
      %p203 = pneg %p89
      %p204 = pneg %p113
      %p205 = pneg %p110
      %p206 = pneg %p141
      %p207 = pneg %p138
      %s208 = smul.u32 32, %s20
      %p209 = scmp.lt.s32.totalorder %s19, 1
      %s210 = scalar_select %p209, %s19, 1
      %p211 = scmp.lt.s32.totalorder %s208, 31
      %s212 = scalar_select %p211, %s208, 31
      %s213 = smul.addr %s210, 32
      %s214 = sadd.s32 %s212, %s213
      %s215 = smul.addr %s214, 4
      %s216 = scalar_lea.vmem %s4, %s215
      %s217 = smul.u32 32, %s20
      %p218 = scmp.lt.s32.totalorder %s19, 1
      %s219 = scalar_select %p218, %s19, 1
      %p220 = scmp.lt.s32.totalorder %s217, 31
      %s221 = scalar_select %p220, %s217, 31
      %s222 = smul.addr %s219, 32
      %s223 = sadd.s32 %s221, %s222
      %s224 = smul.addr %s223, 4
      %s225 = scalar_lea.vmem %s0, %s224
      %s226 = smul.u32 32, %s20
      %s227 = smul.u32 32, %s20
      %p228 = scmp.lt.s32.totalorder %s19, 1
      %s229 = scalar_select %p228, %s19, 1
      %p230 = scmp.lt.s32.totalorder %s227, 31
      %s231 = scalar_select %p230, %s227, 31
      %s232 = smul.addr %s229, 32
      %s233 = sadd.s32 %s231, %s232
      %s234 = smul.addr %s233, 4
      %s235 = scalar_lea.vmem %s4, %s234
      %s236 = smul.u32 32, %s20
      %v238 = vld [vmem:[%s225] sm:$0xf]
      %v239 = vld [vmem:[%s225 + $0x4] sm:$0xf]
      %v240 = vld [vmem:[%s225 + $0x8] sm:$0xf]
      %v241 = vld [vmem:[%s225 + $0xc] sm:$0xf]
      %v242 = vld [vmem:[%s225 + $0x10] sm:$0xf]
      %v243 = vld [vmem:[%s225 + $0x14] sm:$0xf]
      %v244 = vld [vmem:[%s225 + $0x18] sm:$0xf]
      %v245 = vld [vmem:[%s225 + $0x1c] sm:$0xf]
      %v246 = vld [vmem:[%s225 + $0x20] sm:$0xf]
      %v247 = vld [vmem:[%s225 + $0x24] sm:$0xf]
      %v248 = vld [vmem:[%s225 + $0x28] sm:$0xf]
      %v249 = vld [vmem:[%s225 + $0x2c] sm:$0xf]
      %v250 = vld [vmem:[%s225 + $0x30] sm:$0xf]
      %v251 = vld [vmem:[%s225 + $0x34] sm:$0xf]
      %v252 = vld [vmem:[%s225 + $0x38] sm:$0xf]
      %v253 = vld [vmem:[%s225 + $0x3c] sm:$0xf]
      %v254 = vld [vmem:[%s225 + $0x40] sm:$0xf]
      %v255 = vld [vmem:[%s225 + $0x44] sm:$0xf]
      %v256 = vld [vmem:[%s225 + $0x48] sm:$0xf]
      %v257 = vld [vmem:[%s225 + $0x4c] sm:$0xf]
      %v258 = vld [vmem:[%s225 + $0x50] sm:$0xf]
      %v259 = vld [vmem:[%s225 + $0x54] sm:$0xf]
      %v260 = vld [vmem:[%s225 + $0x58] sm:$0xf]
      %v261 = vld [vmem:[%s225 + $0x5c] sm:$0xf]
      %v262 = vld [vmem:[%s225 + $0x60] sm:$0xf]
      %v263 = vld [vmem:[%s225 + $0x64] sm:$0xf]
      %v264 = vld [vmem:[%s225 + $0x68] sm:$0xf]
      %v265 = vld [vmem:[%s225 + $0x6c] sm:$0xf]
      %v266 = vld [vmem:[%s225 + $0x70] sm:$0xf]
      %v267 = vld [vmem:[%s225 + $0x74] sm:$0xf]
      %v268 = vld [vmem:[%s225 + $0x78] sm:$0xf]
      %v269 = vld [vmem:[%s225 + $0x7c] sm:$0xf]
      %v270 = vld [vmem:[%s1] sm:$0xf]
      %v271 = vld [vmem:[%s1 + $0x4] sm:$0xf]
      %v272 = vld [vmem:[%s1 + $0x8] sm:$0xf]
      %v273 = vld [vmem:[%s1 + $0xc] sm:$0xf]
      %v274 = vld [vmem:[%s1 + $0x10] sm:$0xf]
      %v307 = vunpack.c.l.b16 %v238
      %v308 = vunpack.c.l.b16 %v239
      %v309 = vunpack.c.l.b16 %v240
      %v310 = vunpack.c.l.b16 %v241
      %v311 = vunpack.c.l.b16 %v242
      %v312 = vunpack.c.l.b16 %v243
      %v313 = vunpack.c.l.b16 %v244
      %v314 = vunpack.c.l.b16 %v245
      %v315 = vunpack.c.l.b16 %v246
      %v316 = vunpack.c.l.b16 %v247
      %v317 = vunpack.c.l.b16 %v248
      %v318 = vunpack.c.l.b16 %v249
      %v319 = vunpack.c.l.b16 %v250
      %v320 = vunpack.c.l.b16 %v251
      %v321 = vunpack.c.l.b16 %v252
      %v322 = vunpack.c.l.b16 %v253
      %v323 = vunpack.c.l.b16 %v254
      %v324 = vunpack.c.l.b16 %v255
      %v325 = vunpack.c.l.b16 %v256
      %v326 = vunpack.c.l.b16 %v257
      %v327 = vunpack.c.l.b16 %v258
      %v328 = vunpack.c.l.b16 %v259
      %v329 = vunpack.c.l.b16 %v260
      %v330 = vunpack.c.l.b16 %v261
      %v331 = vunpack.c.l.b16 %v262
      %v332 = vunpack.c.l.b16 %v263
      %v333 = vunpack.c.l.b16 %v264
      %v334 = vunpack.c.l.b16 %v265
      %v335 = vunpack.c.l.b16 %v266
      %v336 = vunpack.c.l.b16 %v267
      %v337 = vunpack.c.l.b16 %v268
      %v338 = vunpack.c.l.b16 %v269
      %v339 = vpack.c.b16 %v308, %v307
      %v340 = vpack.c.b16 %v310, %v309
      %v341 = vpack.c.b16 %v312, %v311
      %v342 = vpack.c.b16 %v314, %v313
      %v343 = vpack.c.b16 %v316, %v315
      %v344 = vpack.c.b16 %v318, %v317
      %v345 = vpack.c.b16 %v320, %v319
      %v346 = vpack.c.b16 %v322, %v321
      %v347 = vpack.c.b16 %v324, %v323
      %v348 = vpack.c.b16 %v326, %v325
      %v349 = vpack.c.b16 %v328, %v327
      %v350 = vpack.c.b16 %v330, %v329
      %v351 = vpack.c.b16 %v332, %v331
      %v352 = vpack.c.b16 %v334, %v333
      %v353 = vpack.c.b16 %v336, %v335
      %v354 = vpack.c.b16 %v338, %v337
      %v360 = vunpack.c.l.b16 %v270
      %v361 = vunpack.c.l.b16 %v271
      %v362 = vunpack.c.l.b16 %v272
      %v363 = vunpack.c.l.b16 %v273
      %v364 = vunpack.c.l.b16 %v274
      %v365 = vpack.c.b16 %v361, %v360
      %v366 = vpack.c.b16 %v363, %v362
      %v367 = vpack.c.b16 %v364, %v364
      %vm370 = vcmask 326656
      %v372 = vsel %vm370, %v339, 0
      %v375 = vsel %vm370, %v340, 0
      %v378 = vsel %vm370, %v341, 0
      %v381 = vsel %vm370, %v342, 0
      %v384 = vsel %vm370, %v343, 0
      %v387 = vsel %vm370, %v344, 0
      %v390 = vsel %vm370, %v345, 0
      %v393 = vsel %vm370, %v346, 0
      %v396 = vsel %vm370, %v347, 0
      %v399 = vsel %vm370, %v348, 0
      %v402 = vsel %vm370, %v349, 0
      %v405 = vsel %vm370, %v350, 0
      %v408 = vsel %vm370, %v351, 0
      %v411 = vsel %vm370, %v352, 0
      %v414 = vsel %vm370, %v353, 0
      %v417 = vsel %vm370, %v354, 0
      %vm419 = vcmask 1043456
      %v421 = vsel %vm419, %v367, 0
      %423 = vmatpush.bf16.msra.mxu0 0
      %424 = vmatpush.bf16.msra.mxu0 0
      %425 = vmatpush.bf16.msra.mxu0 0
      %426 = vmatpush.bf16.msra.mxu0 0
      %427 = vmatpush.bf16.msra.mxu0 0
      %428 = vmatpush.bf16.msra.mxu0 %v421
      %429 = vmatpush.bf16.msra.mxu0 %v366
      %430 = vmatpush.bf16.msra.mxu0 %v365
      %431 = vmatmul.bf16.gmra.mxu0 %v372
      %v432 = vpop.f32.mrf.mxu0
      %v433 = vadd.f32 0.0, %v432
      %v434 = vpop.f32.mrf.mxu0
      %v435 = vadd.f32 0.0, %v434
      %436 = vmatmul.bf16.gmra.mxu0 %v375
      %v437 = vpop.f32.mrf.mxu0
      %v438 = vadd.f32 0.0, %v437
      %v439 = vpop.f32.mrf.mxu0
      %v440 = vadd.f32 0.0, %v439
      %441 = vmatmul.bf16.gmra.mxu0 %v378
      %v442 = vpop.f32.mrf.mxu0
      %v443 = vadd.f32 0.0, %v442
      %v444 = vpop.f32.mrf.mxu0
      %v445 = vadd.f32 0.0, %v444
      %446 = vmatmul.bf16.gmra.mxu0 %v381
      %v447 = vpop.f32.mrf.mxu0
      %v448 = vadd.f32 0.0, %v447
      %v449 = vpop.f32.mrf.mxu0
      %v450 = vadd.f32 0.0, %v449
      %451 = vmatmul.bf16.gmra.mxu0 %v384
      %v452 = vpop.f32.mrf.mxu0
      %v453 = vadd.f32 0.0, %v452
      %v454 = vpop.f32.mrf.mxu0
      %v455 = vadd.f32 0.0, %v454
      %456 = vmatmul.bf16.gmra.mxu0 %v387
      %v457 = vpop.f32.mrf.mxu0
      %v458 = vadd.f32 0.0, %v457
      %v459 = vpop.f32.mrf.mxu0
      %v460 = vadd.f32 0.0, %v459
      %461 = vmatmul.bf16.gmra.mxu0 %v390
      %v462 = vpop.f32.mrf.mxu0
      %v463 = vadd.f32 0.0, %v462
      %v464 = vpop.f32.mrf.mxu0
      %v465 = vadd.f32 0.0, %v464
      %466 = vmatmul.bf16.gmra.mxu0 %v393
      %v467 = vpop.f32.mrf.mxu0
      %v468 = vadd.f32 0.0, %v467
      %v469 = vpop.f32.mrf.mxu0
      %v470 = vadd.f32 0.0, %v469
      %471 = vmatmul.bf16.gmra.mxu0 %v396
      %v472 = vpop.f32.mrf.mxu0
      %v473 = vadd.f32 0.0, %v472
      %v474 = vpop.f32.mrf.mxu0
      %v475 = vadd.f32 0.0, %v474
      %476 = vmatmul.bf16.gmra.mxu0 %v399
      %v477 = vpop.f32.mrf.mxu0
      %v478 = vadd.f32 0.0, %v477
      %v479 = vpop.f32.mrf.mxu0
      %v480 = vadd.f32 0.0, %v479
      %481 = vmatmul.bf16.gmra.mxu0 %v402
      %v482 = vpop.f32.mrf.mxu0
      %v483 = vadd.f32 0.0, %v482
      %v484 = vpop.f32.mrf.mxu0
      %v485 = vadd.f32 0.0, %v484
      %486 = vmatmul.bf16.gmra.mxu0 %v405
      %v487 = vpop.f32.mrf.mxu0
      %v488 = vadd.f32 0.0, %v487
      %v489 = vpop.f32.mrf.mxu0
      %v490 = vadd.f32 0.0, %v489
      %491 = vmatmul.bf16.gmra.mxu0 %v408
      %v492 = vpop.f32.mrf.mxu0
      %v493 = vadd.f32 0.0, %v492
      %v494 = vpop.f32.mrf.mxu0
      %v495 = vadd.f32 0.0, %v494
      %496 = vmatmul.bf16.gmra.mxu0 %v411
      %v497 = vpop.f32.mrf.mxu0
      %v498 = vadd.f32 0.0, %v497
      %v499 = vpop.f32.mrf.mxu0
      %v500 = vadd.f32 0.0, %v499
      %501 = vmatmul.bf16.gmra.mxu0 %v414
      %v502 = vpop.f32.mrf.mxu0
      %v503 = vadd.f32 0.0, %v502
      %v504 = vpop.f32.mrf.mxu0
      %v505 = vadd.f32 0.0, %v504
      %506 = vmatmul.bf16.gmra.mxu0 %v417
      %v507 = vpop.f32.mrf.mxu0
      %v508 = vadd.f32 0.0, %v507
      %v509 = vpop.f32.mrf.mxu0
      %v510 = vadd.f32 0.0, %v509
      %511 = vdwg.mxu0
      %v512 = vld [vmem:[%s2] sm:$0x1]
      %v514 = vperm.slane %v512, 0
      %v516 = vmul.f32 %v433, %v514
      %v517 = vmul.f32 %v435, %v514
      %v518 = vmul.f32 %v438, %v514
      %v519 = vmul.f32 %v440, %v514
      %v520 = vmul.f32 %v443, %v514
      %v521 = vmul.f32 %v445, %v514
      %v522 = vmul.f32 %v448, %v514
      %v523 = vmul.f32 %v450, %v514
      %v524 = vmul.f32 %v453, %v514
      %v525 = vmul.f32 %v455, %v514
      %v526 = vmul.f32 %v458, %v514
      %v527 = vmul.f32 %v460, %v514
      %v528 = vmul.f32 %v463, %v514
      %v529 = vmul.f32 %v465, %v514
      %v530 = vmul.f32 %v468, %v514
      %v531 = vmul.f32 %v470, %v514
      %v532 = vmul.f32 %v473, %v514
      %v533 = vmul.f32 %v475, %v514
      %v534 = vmul.f32 %v478, %v514
      %v535 = vmul.f32 %v480, %v514
      %v536 = vmul.f32 %v483, %v514
      %v537 = vmul.f32 %v485, %v514
      %v538 = vmul.f32 %v488, %v514
      %v539 = vmul.f32 %v490, %v514
      %v540 = vmul.f32 %v493, %v514
      %v541 = vmul.f32 %v495, %v514
      %v542 = vmul.f32 %v498, %v514
      %v543 = vmul.f32 %v500, %v514
      %v544 = vmul.f32 %v503, %v514
      %v545 = vmul.f32 %v505, %v514
      %v546 = vmul.f32 %v508, %v514
      %v547 = vmul.f32 %v510, %v514
      %v548 = vld [vmem:[%s3] sm:$0x1]
      %v550 = vperm.slane %v548, 0
      %v552 = vadd.f32 %v516, %v550
      %v553 = vadd.f32 %v517, %v550
      %v554 = vadd.f32 %v518, %v550
      %v555 = vadd.f32 %v519, %v550
      %v556 = vadd.f32 %v520, %v550
      %v557 = vadd.f32 %v521, %v550
      %v558 = vadd.f32 %v522, %v550
      %v559 = vadd.f32 %v523, %v550
      %v560 = vadd.f32 %v524, %v550
      %v561 = vadd.f32 %v525, %v550
      %v562 = vadd.f32 %v526, %v550
      %v563 = vadd.f32 %v527, %v550
      %v564 = vadd.f32 %v528, %v550
      %v565 = vadd.f32 %v529, %v550
      %v566 = vadd.f32 %v530, %v550
      %v567 = vadd.f32 %v531, %v550
      %v568 = vadd.f32 %v532, %v550
      %v569 = vadd.f32 %v533, %v550
      %v570 = vadd.f32 %v534, %v550
      %v571 = vadd.f32 %v535, %v550
      %v572 = vadd.f32 %v536, %v550
      %v573 = vadd.f32 %v537, %v550
      %v574 = vadd.f32 %v538, %v550
      %v575 = vadd.f32 %v539, %v550
      %v576 = vadd.f32 %v540, %v550
      %v577 = vadd.f32 %v541, %v550
      %v578 = vadd.f32 %v542, %v550
      %v579 = vadd.f32 %v543, %v550
      %v580 = vadd.f32 %v544, %v550
      %v581 = vadd.f32 %v545, %v550
      %v582 = vadd.f32 %v546, %v550
      %v583 = vadd.f32 %v547, %v550
      %v584 = vmax.f32 %v552, 0.0
      %v585 = vmax.f32 %v553, 0.0
      %v586 = vmax.f32 %v554, 0.0
      %v587 = vmax.f32 %v555, 0.0
      %v588 = vmax.f32 %v556, 0.0
      %v589 = vmax.f32 %v557, 0.0
      %v590 = vmax.f32 %v558, 0.0
      %v591 = vmax.f32 %v559, 0.0
      %v592 = vmax.f32 %v560, 0.0
      %v593 = vmax.f32 %v561, 0.0
      %v594 = vmax.f32 %v562, 0.0
      %v595 = vmax.f32 %v563, 0.0
      %v596 = vmax.f32 %v564, 0.0
      %v597 = vmax.f32 %v565, 0.0
      %v598 = vmax.f32 %v566, 0.0
      %v599 = vmax.f32 %v567, 0.0
      %v600 = vmax.f32 %v568, 0.0
      %v601 = vmax.f32 %v569, 0.0
      %v602 = vmax.f32 %v570, 0.0
      %v603 = vmax.f32 %v571, 0.0
      %v604 = vmax.f32 %v572, 0.0
      %v605 = vmax.f32 %v573, 0.0
      %v606 = vmax.f32 %v574, 0.0
      %v607 = vmax.f32 %v575, 0.0
      %v608 = vmax.f32 %v576, 0.0
      %v609 = vmax.f32 %v577, 0.0
      %v610 = vmax.f32 %v578, 0.0
      %v611 = vmax.f32 %v579, 0.0
      %v612 = vmax.f32 %v580, 0.0
      %v613 = vmax.f32 %v581, 0.0
      %v614 = vmax.f32 %v582, 0.0
      %v615 = vmax.f32 %v583, 0.0
      %v616 = vpack.c.bf16 %v584, %v584
      %v617 = vpack.c.bf16 %v585, %v585
      %v618 = vpack.c.bf16 %v586, %v586
      %v619 = vpack.c.bf16 %v587, %v587
      %v620 = vpack.c.bf16 %v588, %v588
      %v621 = vpack.c.bf16 %v589, %v589
      %v622 = vpack.c.bf16 %v590, %v590
      %v623 = vpack.c.bf16 %v591, %v591
      %v624 = vpack.c.bf16 %v592, %v592
      %v625 = vpack.c.bf16 %v593, %v593
      %v626 = vpack.c.bf16 %v594, %v594
      %v627 = vpack.c.bf16 %v595, %v595
      %v628 = vpack.c.bf16 %v596, %v596
      %v629 = vpack.c.bf16 %v597, %v597
      %v630 = vpack.c.bf16 %v598, %v598
      %v631 = vpack.c.bf16 %v599, %v599
      %v632 = vpack.c.bf16 %v600, %v600
      %v633 = vpack.c.bf16 %v601, %v601
      %v634 = vpack.c.bf16 %v602, %v602
      %v635 = vpack.c.bf16 %v603, %v603
      %v636 = vpack.c.bf16 %v604, %v604
      %v637 = vpack.c.bf16 %v605, %v605
      %v638 = vpack.c.bf16 %v606, %v606
      %v639 = vpack.c.bf16 %v607, %v607
      %v640 = vpack.c.bf16 %v608, %v608
      %v641 = vpack.c.bf16 %v609, %v609
      %v642 = vpack.c.bf16 %v610, %v610
      %v643 = vpack.c.bf16 %v611, %v611
      %v644 = vpack.c.bf16 %v612, %v612
      %v645 = vpack.c.bf16 %v613, %v613
      %v646 = vpack.c.bf16 %v614, %v614
      %v647 = vpack.c.bf16 %v615, %v615
      %648 = vst [vmem:[%s235] sm:$0xf] %v616
      %649 = vst [vmem:[%s235 + $0x4] sm:$0xf] %v617
      %650 = vst [vmem:[%s235 + $0x8] sm:$0xf] %v618
      %651 = vst [vmem:[%s235 + $0xc] sm:$0xf] %v619
      %652 = vst [vmem:[%s235 + $0x10] sm:$0xf] %v620
      %653 = vst [vmem:[%s235 + $0x14] sm:$0xf] %v621
      %654 = vst [vmem:[%s235 + $0x18] sm:$0xf] %v622
      %655 = vst [vmem:[%s235 + $0x1c] sm:$0xf] %v623
      %656 = vst [vmem:[%s235 + $0x20] sm:$0xf] %v624
      %657 = vst [vmem:[%s235 + $0x24] sm:$0xf] %v625
      %658 = vst [vmem:[%s235 + $0x28] sm:$0xf] %v626
      %659 = vst [vmem:[%s235 + $0x2c] sm:$0xf] %v627
      %660 = vst [vmem:[%s235 + $0x30] sm:$0xf] %v628
      %661 = vst [vmem:[%s235 + $0x34] sm:$0xf] %v629
      %662 = vst [vmem:[%s235 + $0x38] sm:$0xf] %v630
      %663 = vst [vmem:[%s235 + $0x3c] sm:$0xf] %v631
      %664 = vst [vmem:[%s235 + $0x40] sm:$0xf] %v632
      %665 = vst [vmem:[%s235 + $0x44] sm:$0xf] %v633
      %666 = vst [vmem:[%s235 + $0x48] sm:$0xf] %v634
      %667 = vst [vmem:[%s235 + $0x4c] sm:$0xf] %v635
      %668 = vst [vmem:[%s235 + $0x50] sm:$0xf] %v636
      %669 = vst [vmem:[%s235 + $0x54] sm:$0xf] %v637
      %670 = vst [vmem:[%s235 + $0x58] sm:$0xf] %v638
      %671 = vst [vmem:[%s235 + $0x5c] sm:$0xf] %v639
      %672 = vst [vmem:[%s235 + $0x60] sm:$0xf] %v640
      %673 = vst [vmem:[%s235 + $0x64] sm:$0xf] %v641
      %674 = vst [vmem:[%s235 + $0x68] sm:$0xf] %v642
      %675 = vst [vmem:[%s235 + $0x6c] sm:$0xf] %v643
      %676 = vst [vmem:[%s235 + $0x70] sm:$0xf] %v644
      %677 = vst [vmem:[%s235 + $0x74] sm:$0xf] %v645
      %678 = vst [vmem:[%s235 + $0x78] sm:$0xf] %v646
      %679 = vst [vmem:[%s235 + $0x7c] sm:$0xf] %v647
      %s680 = smul.u32 32, %s20
      %p681 = scmp.lt.s32.totalorder %s19, 1
      %s682 = scalar_select %p681, %s19, 1
      %p683 = scmp.lt.s32.totalorder %s680, 31
      %s684 = scalar_select %p683, %s680, 31
      %s685 = smul.addr %s682, 32
      %s686 = sadd.s32 %s684, %s685
      %s687 = smul.addr %s686, 4
      %s688 = scalar_lea.vmem %s4, %s687
      // Predicated region
      $region37: #{conv_bn_relu.1} parent=35 // pred_check
        %p689 = pneg %p138
      $region38: #{conv_bn_relu.1} parent=35 // pred_check_branch
        %691 = sbr.rel (%p689) target = $region40
      $region39: #{conv_bn_relu.1} parent=35 // pred_region
        %s692 = smul.u32 32, %s20
      $region40: #{conv_bn_relu.1} parent=35 // pred_fallthru
        _
    $region36: #{conv_bn_relu.1} parent=5 // pred_fallthru
      _
    %p693 = scmp.le.s32.totalorder 2, %s10
    // Predicated region
    $region41: #{conv_bn_relu.1} parent=5 // pred_check
      %p694 = pneg %p693
    $region42: #{conv_bn_relu.1} parent=5 // pred_check_branch
      %696 = sbr.rel (%p694) target = $region44
    $region43: #{conv_bn_relu.1} parent=5 // pred_region
      %s697 = ssub.s32 %s10, 2
      // Predicated region
      $region45: #{conv_bn_relu.1} parent=43 // pred_check
        %p698 = pneg %p144
      $region46: #{conv_bn_relu.1} parent=43 // pred_check_branch
        %700 = sbr.rel (%p698) target = $region48
      $region47: #{conv_bn_relu.1} parent=43 // pred_region
        %s701 = smul.u32 32, %s22
        %p702 = scmp.lt.s32.totalorder %s21, 1
        %s703 = scalar_select %p702, %s21, 1
        %p704 = scmp.lt.s32.totalorder %s701, 31
        %s705 = scalar_select %p704, %s701, 31
        %s706 = smul.addr %s703, 32
        %s707 = sadd.s32 %s705, %s706
        %s708 = smul.addr %s707, 4
        %s709 = scalar_lea.vmem %s4, %s708
      $region48: #{conv_bn_relu.1} parent=43 // pred_fallthru
        _
    $region44: #{conv_bn_relu.1} parent=5 // pred_fallthru
      _
  $region6: #{conv_bn_relu.1} parent=0 // loop_footer
    %s14 = sadd.s32 1, %s10
  $region7: #{conv_bn_relu.1} parent=0 // loop_footer_branch
    %9 = sbr.rel target = $region3
  $region8: #{conv_bn_relu.1} parent=0 // loop_exit
    _

</llo_original>
